<compile_context>
chip_gen: v5e
topology: v5e:2x2
jax: 0.10.0
libtpu: 0.0.40
codegen_flags: <defaults>
</compile_context>

<pallas_src>
import jax
import jax.numpy as jnp
from jax.experimental import pallas as pl
from jax.experimental.pallas import tpu as pltpu

_LANE = 128
_MAX_TILE_N = 2048
# Conservative VMEM budget: fits v7x's 64 MiB physical VMEM with headroom and
# is far below v5e/v6e's 128 MiB.
_VMEM_BUDGET = 40 * 1024 * 1024


def _sigmoid(pre):
    # exp and the approx reciprocal both land on the EUP slot; math is f32.
    return pl.reciprocal(1.0 + jnp.exp(-pre), approx=True)


def _make_kernel(activation):
    def kernel(w_ref, u_ref, b_ref, x_ref, h_ref, o_ref):
        # bf16 MXU operands, f32 accumulation. The casts are VPU work hidden
        # under DMA and are no-ops if the caller already passes bf16.
        w = w_ref[...].astype(jnp.bfloat16)
        u = u_ref[...].astype(jnp.bfloat16)
        x = x_ref[...].astype(jnp.bfloat16)
        h = h_ref[...].astype(jnp.bfloat16)
        pre = jnp.dot(w, x, preferred_element_type=jnp.float32)
        pre = pre + jnp.dot(u, h, preferred_element_type=jnp.float32)
        pre = pre + b_ref[...].astype(jnp.float32)
        o_ref[...] = activation(pre).astype(o_ref.dtype)

    return kernel


def _resident_spec(shape):
    # Constant block index -> the weight stays resident in VMEM across the
    # whole grid; request a single buffer so it doesn't get a useless second
    # pipeline copy.
    try:
        return pl.BlockSpec(shape, lambda j: (0, 0),
                            pipeline_mode=pl.Buffered(1))
    except (TypeError, AttributeError):
        # Older Pallas without pipeline_mode: fall back to default buffering.
        return pl.BlockSpec(shape, lambda j: (0, 0))


def _pick_tile_n(in_feat, out_feat):
    if out_feat <= _LANE:
        return out_feat                       # full-extent block (always legal)
    itemsize = 4                              # conservative f32 accounting
    weight_bytes = 2 * in_feat * in_feat * itemsize        # resident W + U
    stream_budget = max(_VMEM_BUDGET - weight_bytes, 2 * 1024 * 1024)
    # Per output lane: double-buffered x, h, bias tiles + double-buffered out.
    bytes_per_lane = 2 * 4 * in_feat * itemsize
    cap_vmem = max(stream_budget // bytes_per_lane, _LANE)
    # Keep >= 2 grid steps when possible so the "parallel" axis can actually be
    # split across v7x's two TensorCores (harmless on v5e/v6e).
    cap_split = max(pl.cdiv(out_feat, 2), _LANE)
    tile_n = min(_MAX_TILE_N, cap_vmem, cap_split, out_feat)
    return max(_LANE, (tile_n // _LANE) * _LANE)    # lane-dense multiple of 128


def gru_gate(W, U, bias, x, h, activation=_sigmoid):
    in_feat = W.shape[0]
    out_feat = x.shape[1]
    assert W.shape == (in_feat, in_feat)
    assert U.shape == (in_feat, in_feat)
    assert bias.shape == (in_feat, out_feat)
    assert x.shape == (in_feat, out_feat)
    assert h.shape == (in_feat, out_feat)

    tile_n = _pick_tile_n(in_feat, out_feat)
    grid_n = pl.cdiv(out_feat, tile_n)

    # VMEM footprint: resident W,U + double-buffered x/h/bias/out tiles.
    itemsize = 4
    footprint = (2 * in_feat * in_feat + 8 * in_feat * tile_n) * itemsize
    vmem_limit = int(min(max(2 * footprint, 32 * 1024 * 1024),
                         56 * 1024 * 1024))

    def stream_spec():
        return pl.BlockSpec((in_feat, tile_n), lambda j: (0, j))

    return pl.pallas_call(
        _make_kernel(activation),
        out_shape=jax.ShapeDtypeStruct((in_feat, out_feat), x.dtype),
        grid_spec=pltpu.PrefetchScalarGridSpec(
            num_scalar_prefetch=0,
            grid=(grid_n,),
            in_specs=[
                _resident_spec((in_feat, in_feat)),   # W  (resident)
                _resident_spec((in_feat, in_feat)),   # U  (resident)
                stream_spec(),                        # bias tile
                stream_spec(),                        # x tile
                stream_spec(),                        # h tile
            ],
            out_specs=stream_spec(),
        ),
        compiler_params=pltpu.CompilerParams(
            dimension_semantics=("parallel",),
            vmem_limit_bytes=vmem_limit,
        ),
    )(W, U, bias, x, h)


def reference(W, U, bias, x, h):
    return jax.nn.sigmoid(W @ x + U @ h + bias)


if __name__ == "__main__":
    in_feat, out_feat = 32, 256

    key = jax.random.PRNGKey(0)
    kw, ku, kx, kh = jax.random.split(key, 4)

    # Deterministic init mirroring the module's reset_parameters():
    #   xavier_uniform_ for W, U ; zeros_ for bias (full 2D bias per spec).
    bound = (6.0 / (in_feat + in_feat)) ** 0.5
    W = jax.random.uniform(kw, (in_feat, in_feat), jnp.float32, -bound, bound)
    U = jax.random.uniform(ku, (in_feat, in_feat), jnp.float32, -bound, bound)
    bias = jnp.zeros((in_feat, out_feat), jnp.float32)

    x = jax.random.normal(kx, (in_feat, out_feat), jnp.float32)
    h = jax.random.normal(kh, (in_feat, out_feat), jnp.float32)

    out = jax.block_until_ready(gru_gate(W, U, bias, x, h))
    ref = reference(W, U, bias, x, h)

    assert out.shape == (in_feat, out_feat)
    # Tolerance relaxed vs. the f32 reference: MXU operands are bf16 and the
    # sigmoid uses the EUP approx reciprocal.
    assert jnp.allclose(out, ref, atol=2e-2, rtol=2e-2), float(
        jnp.max(jnp.abs(out - ref)))

    print("KERNEL_OK")
</pallas_src>

<mosaic_0001>
module attributes {stable_mosaic.version = 11 : i64} {
  func.func @kernel(%arg0: i32, %arg1: memref<32x32xf32, #tpu.memory_space<vmem>>, %arg2: memref<32x32xf32, #tpu.memory_space<vmem>>, %arg3: memref<32x128xf32, #tpu.memory_space<vmem>>, %arg4: memref<32x128xf32, #tpu.memory_space<vmem>>, %arg5: memref<32x128xf32, #tpu.memory_space<vmem>>, %arg6: memref<32x128xf32, #tpu.memory_space<vmem>>) attributes {dimension_semantics = [#tpu.dimension_semantics<parallel>], iteration_bounds = array<i64: 2>, scalar_prefetch = 0 : i64, scratch_operands = 0 : i64, tpu.core_type = #tpu.core_type<tc>, window_params = [{pipeline_mode = #tpu.pipeline_mode<synchronous>, transform_indices = @transform_0, window_bounds = array<i64: 32, 32>}, {pipeline_mode = #tpu.pipeline_mode<synchronous>, transform_indices = @transform_1, window_bounds = array<i64: 32, 32>}, {transform_indices = @transform_2, window_bounds = array<i64: 32, 128>}, {transform_indices = @transform_3, window_bounds = array<i64: 32, 128>}, {transform_indices = @transform_4, window_bounds = array<i64: 32, 128>}, {transform_indices = @transform_5, window_bounds = array<i64: 32, 128>}]} {
    %c0 = arith.constant 0 : index
    %c0_0 = arith.constant 0 : index
    %0 = vector.load %arg1[%c0, %c0_0] : memref<32x32xf32, #tpu.memory_space<vmem>>, vector<32x32xf32>
    %1 = arith.truncf %0 : vector<32x32xf32> to vector<32x32xbf16>
    %c0_1 = arith.constant 0 : index
    %c0_2 = arith.constant 0 : index
    %2 = vector.load %arg2[%c0_1, %c0_2] : memref<32x32xf32, #tpu.memory_space<vmem>>, vector<32x32xf32>
    %3 = arith.truncf %2 : vector<32x32xf32> to vector<32x32xbf16>
    %c0_3 = arith.constant 0 : index
    %c0_4 = arith.constant 0 : index
    %4 = vector.load %arg4[%c0_3, %c0_4] : memref<32x128xf32, #tpu.memory_space<vmem>>, vector<32x128xf32>
    %5 = arith.truncf %4 : vector<32x128xf32> to vector<32x128xbf16>
    %c0_5 = arith.constant 0 : index
    %c0_6 = arith.constant 0 : index
    %6 = vector.load %arg5[%c0_5, %c0_6] : memref<32x128xf32, #tpu.memory_space<vmem>>, vector<32x128xf32>
    %7 = arith.truncf %6 : vector<32x128xf32> to vector<32x128xbf16>
    %cst = arith.constant dense<0.000000e+00> : vector<32x128xf32>
    %8 = tpu.matmul %1, %5, %cst {dimension_numbers = #tpu.dot_dimension_numbers<[1], [0], [0], [1], [0, 0, 1, 1], [], []>} : vector<32x32xbf16>, vector<32x128xbf16>, vector<32x128xf32> -> vector<32x128xf32>
    %cst_7 = arith.constant dense<0.000000e+00> : vector<32x128xf32>
    %9 = tpu.matmul %3, %7, %cst_7 {dimension_numbers = #tpu.dot_dimension_numbers<[1], [0], [0], [1], [0, 0, 1, 1], [], []>} : vector<32x32xbf16>, vector<32x128xbf16>, vector<32x128xf32> -> vector<32x128xf32>
    %10 = arith.addf %8, %9 : vector<32x128xf32>
    %c0_8 = arith.constant 0 : index
    %c0_9 = arith.constant 0 : index
    %11 = vector.load %arg3[%c0_8, %c0_9] : memref<32x128xf32, #tpu.memory_space<vmem>>, vector<32x128xf32>
    %12 = arith.addf %10, %11 : vector<32x128xf32>
    %cst_10 = arith.constant 0.000000e+00 : f32
    %13 = vector.broadcast %cst_10 : f32 to vector<32x128xf32>
    %14 = arith.subf %13, %12 : vector<32x128xf32>
    %15 = math.exp %14 : vector<32x128xf32>
    %cst_11 = arith.constant 1.000000e+00 : f32
    %16 = vector.broadcast %cst_11 : f32 to vector<32x128xf32>
    %17 = arith.addf %16, %15 : vector<32x128xf32>
    %18 = tpu.reciprocal %17 {approx = true} : vector<32x128xf32> -> vector<32x128xf32>
    %c0_12 = arith.constant 0 : index
    %c0_13 = arith.constant 0 : index
    %19 = vector.load %arg6[%c0_12, %c0_13] : memref<32x128xf32, #tpu.memory_space<vmem>>, vector<32x128xf32>
    tpu.vector_store %arg6[%c0_12, %c0_13], %18 {strides = array<i32>} : memref<32x128xf32, #tpu.memory_space<vmem>>, vector<32x128xf32>,
    return
  }
  func.func @transform_0(%arg0: i32) -> (i32, i32) {
    %c0_i32 = arith.constant 0 : i32
    %c0_i32_0 = arith.constant 0 : i32
    %c0_i32_1 = arith.constant 0 : i32
    return %c0_i32, %c0_i32_0 : i32, i32
  }
  func.func @transform_1(%arg0: i32) -> (i32, i32) {
    %c0_i32 = arith.constant 0 : i32
    %c0_i32_0 = arith.constant 0 : i32
    %c0_i32_1 = arith.constant 0 : i32
    return %c0_i32, %c0_i32_0 : i32, i32
  }
  func.func @transform_2(%arg0: i32) -> (i32, i32) {
    %c0_i32 = arith.constant 0 : i32
    %c0_i32_0 = arith.constant 0 : i32
    return %c0_i32, %arg0 : i32, i32
  }
  func.func @transform_3(%arg0: i32) -> (i32, i32) {
    %c0_i32 = arith.constant 0 : i32
    %c0_i32_0 = arith.constant 0 : i32
    return %c0_i32, %arg0 : i32, i32
  }
  func.func @transform_4(%arg0: i32) -> (i32, i32) {
    %c0_i32 = arith.constant 0 : i32
    %c0_i32_0 = arith.constant 0 : i32
    return %c0_i32, %arg0 : i32, i32
  }
  func.func @transform_5(%arg0: i32) -> (i32, i32) {
    %c0_i32 = arith.constant 0 : i32
    %c0_i32_0 = arith.constant 0 : i32
    return %c0_i32, %arg0 : i32, i32
  }
}

</mosaic_0001>

<llo_original>
// kernel: tpu_custom_call.1
$region0: #{tpu_custom_call.1}
  #allocation0 [shape = 'u32[]', space=smem, size = 0x4, offset = 0x4, fixed_abs, tag = 'smem constant byte address 0x4 - core index']
  #allocation1 [shape = 'u32[72,128]{1,0:T(1,128)}', space=vmem, size = 0x9000, scoped, tag = 'internal scratch']
  %s0 = inlined_call_operand.hbm [shape: f32[32,32], index: 0, kind: input, shape index: {}]
  %s1 = inlined_call_operand.hbm [shape: f32[32,32], index: 1, kind: input, shape index: {}]
  %s2 = inlined_call_operand.hbm [shape: f32[32,256], index: 2, kind: input, shape index: {}]
  %s3 = inlined_call_operand.hbm [shape: f32[32,256], index: 3, kind: input, shape index: {}]
  %s4 = inlined_call_operand.hbm [shape: f32[32,256], index: 4, kind: input, shape index: {}]
  %s5 = inlined_call_operand.hbm [shape: f32[32,256], index: 5, kind: output, shape index: {}]
  %s6 = sld [smem:[#allocation0]]
  $region73: #{tpu_custom_call.1} parent=0
    _
  %s8 = ssub.s32 1, %s6
  %s9 = scalar_select 0, %s8, %s6
  $region1: #{tpu_custom_call.1} parent=0
    #allocation2 [shape = 'u8[16384]{0}', space=vmem, size = 0x4000, scoped, tag = 'input window, operand 0, single buffered']
    #allocation3 [shape = 's32[2]{0}', space=sflag, size = 0x8, scoped, tag = 'scoped memory for tpu_custom_call.1']
    #allocation4 [shape = 's32[2]{0}', space=sflag, size = 0x8, scoped, tag = 'scoped memory for tpu_custom_call.1']
    #allocation5 [shape = 'u8[16384]{0}', space=vmem, size = 0x4000, scoped, tag = 'input window, operand 1, single buffered']
    #allocation6 [shape = 's32[1]{0}', space=sflag, size = 0x4, scoped, tag = 'scoped memory for tpu_custom_call.1']
    #allocation7 [shape = 'u8[32768]{0}', space=vmem, size = 0x8000, scoped, tag = 'input window, operand 2']
    #allocation8 [shape = 'u8[32768]{0}', space=vmem, size = 0x8000, scoped, tag = 'input window, operand 3']
    #allocation9 [shape = 'u8[32768]{0}', space=vmem, size = 0x8000, scoped, tag = 'input window, operand 4']
    #allocation10 [shape = 'u8[32768]{0}', space=vmem, size = 0x8000, scoped, tag = 'output window, operand 0']
    %10 = vsyncpa [#allocation3], 0
    %11 = vsyncpa [#allocation6], 0
    %12 = vsyncpa [#allocation4], 0
    %s13 = scalar_lea.sflag [#allocation4], 1
    %14 = vsyncpa %s13, 0
    loop: start=0, step=1, limit=4
    $region2: #{tpu_custom_call.1} parent=1 // loop_pre_header
      _
    $region3: #{tpu_custom_call.1} parent=1 // loop_header
      %s16 = sphi 0, %s20
      %p17 = scmp.ge.s32.totalorder %s16, 4
      %s24 = sphi 0, %s24
      %s26 = sphi 0, %s24
      %s27 = sphi 0, %s26
      %s41 = sphi 0, %s27
      %s45 = sphi 0, %s45
      %s47 = sphi 0, %s45
      %s48 = sphi 0, %s47
      %s62 = sphi 0, %s48
      %s68 = sphi 0, %s70
      %s71 = sphi 0, %s68
      %s72 = sphi 0, %s71
      %s88 = sphi 0, %s72
      %s94 = sphi 0, %s96
      %s97 = sphi 0, %s94
      %s98 = sphi 0, %s97
      %s114 = sphi 0, %s98
      %s120 = sphi 0, %s122
      %s123 = sphi 0, %s120
      %s124 = sphi 0, %s123
      %s140 = sphi 0, %s124
      %s146 = sphi 0, %s148
      %s149 = sphi 0, %s146
      %s150 = sphi 0, %s149
      %s166 = sphi 0, %s150
    $region4: #{tpu_custom_call.1} parent=1 // loop_header_branch
      %19 = sbr.rel (%p17) target = $region8
    $region5: #{tpu_custom_call.1} parent=1 // loop_body
      %s21 = ssub.s32 %s16, 1
      %s22 = ssub.s32 %s16, 2
      %s23 = sadd.s32 %s16, 1
      %s25 = sadd.s32 %s24, 1
      %p28 = scmp.eq.s32.totalorder %s16, 1
      %p29 = scmp.ne.s32.totalorder %s24, %s26
      %p30 = scmp.eq.s32.totalorder %s16, 0
      %p31 = por %p29, %p30
      %p32 = scmp.ne.s32.totalorder %s24, %s26
      %p33 = scmp.eq.s32.totalorder %s21, 1
      %p34 = por %p32, %p33
      %p35 = scmp.ne.s32.totalorder %s26, %s27
      %p36 = scmp.eq.s32.totalorder %s21, 0
      %p37 = por %p35, %p36
      %p38 = scmp.ne.s32.totalorder %s26, %s27
      %p39 = scmp.eq.s32.totalorder %s22, 1
      %p40 = por %p38, %p39
      %p42 = scmp.ne.s32.totalorder %s27, %s41
      %p43 = scmp.eq.s32.totalorder %s22, 0
      %p44 = por %p42, %p43
      %s46 = sadd.s32 %s45, 1
      %p49 = scmp.eq.s32.totalorder %s16, 1
      %p50 = scmp.ne.s32.totalorder %s45, %s47
      %p51 = scmp.eq.s32.totalorder %s16, 0
      %p52 = por %p50, %p51
      %p53 = scmp.ne.s32.totalorder %s45, %s47
      %p54 = scmp.eq.s32.totalorder %s21, 1
      %p55 = por %p53, %p54
      %p56 = scmp.ne.s32.totalorder %s47, %s48
      %p57 = scmp.eq.s32.totalorder %s21, 0
      %p58 = por %p56, %p57
      %p59 = scmp.ne.s32.totalorder %s47, %s48
      %p60 = scmp.eq.s32.totalorder %s22, 1
      %p61 = por %p59, %p60
      %p63 = scmp.ne.s32.totalorder %s48, %s62
      %p64 = scmp.eq.s32.totalorder %s22, 0
      %p65 = por %p63, %p64
      %s66 = ssub.s32 %s16, %s23
      %p67 = scmp.eq.s32.totalorder %s66, 0
      %s69 = sadd.s32 %s68, 1
      %s70 = scalar_select %p67, %s68, %s69
      %p73 = pneg %p67
      %p74 = scmp.eq.s32.totalorder %s16, 1
      %p75 = por %p73, %p74
      %p76 = scmp.ne.s32.totalorder %s68, %s71
      %p77 = scmp.eq.s32.totalorder %s16, 0
      %p78 = por %p76, %p77
      %p79 = scmp.ne.s32.totalorder %s68, %s71
      %p80 = scmp.eq.s32.totalorder %s21, 1
      %p81 = por %p79, %p80
      %p82 = scmp.ne.s32.totalorder %s71, %s72
      %p83 = scmp.eq.s32.totalorder %s21, 0
      %p84 = por %p82, %p83
      %p85 = scmp.ne.s32.totalorder %s71, %s72
      %p86 = scmp.eq.s32.totalorder %s22, 1
      %p87 = por %p85, %p86
      %p89 = scmp.ne.s32.totalorder %s72, %s88
      %p90 = scmp.eq.s32.totalorder %s22, 0
      %p91 = por %p89, %p90
      %s92 = ssub.s32 %s16, %s23
      %p93 = scmp.eq.s32.totalorder %s92, 0
      %s95 = sadd.s32 %s94, 1
      %s96 = scalar_select %p93, %s94, %s95
      %p99 = pneg %p93
      %p100 = scmp.eq.s32.totalorder %s16, 1
      %p101 = por %p99, %p100
      %p102 = scmp.ne.s32.totalorder %s94, %s97
      %p103 = scmp.eq.s32.totalorder %s16, 0
      %p104 = por %p102, %p103
      %p105 = scmp.ne.s32.totalorder %s94, %s97
      %p106 = scmp.eq.s32.totalorder %s21, 1
      %p107 = por %p105, %p106
      %p108 = scmp.ne.s32.totalorder %s97, %s98
      %p109 = scmp.eq.s32.totalorder %s21, 0
      %p110 = por %p108, %p109
      %p111 = scmp.ne.s32.totalorder %s97, %s98
      %p112 = scmp.eq.s32.totalorder %s22, 1
      %p113 = por %p111, %p112
      %p115 = scmp.ne.s32.totalorder %s98, %s114
      %p116 = scmp.eq.s32.totalorder %s22, 0
      %p117 = por %p115, %p116
      %s118 = ssub.s32 %s16, %s23
      %p119 = scmp.eq.s32.totalorder %s118, 0
      %s121 = sadd.s32 %s120, 1
      %s122 = scalar_select %p119, %s120, %s121
      %p125 = pneg %p119
      %p126 = scmp.eq.s32.totalorder %s16, 1
      %p127 = por %p125, %p126
      %p128 = scmp.ne.s32.totalorder %s120, %s123
      %p129 = scmp.eq.s32.totalorder %s16, 0
      %p130 = por %p128, %p129
      %p131 = scmp.ne.s32.totalorder %s120, %s123
      %p132 = scmp.eq.s32.totalorder %s21, 1
      %p133 = por %p131, %p132
      %p134 = scmp.ne.s32.totalorder %s123, %s124
      %p135 = scmp.eq.s32.totalorder %s21, 0
      %p136 = por %p134, %p135
      %p137 = scmp.ne.s32.totalorder %s123, %s124
      %p138 = scmp.eq.s32.totalorder %s22, 1
      %p139 = por %p137, %p138
      %p141 = scmp.ne.s32.totalorder %s124, %s140
      %p142 = scmp.eq.s32.totalorder %s22, 0
      %p143 = por %p141, %p142
      %s144 = ssub.s32 %s16, %s23
      %p145 = scmp.eq.s32.totalorder %s144, 0
      %s147 = sadd.s32 %s146, 1
      %s148 = scalar_select %p145, %s146, %s147
      %p151 = pneg %p145
      %p152 = scmp.eq.s32.totalorder %s16, 1
      %p153 = por %p151, %p152
      %p154 = scmp.ne.s32.totalorder %s146, %s149
      %p155 = scmp.eq.s32.totalorder %s16, 0
      %p156 = por %p154, %p155
      %p157 = scmp.ne.s32.totalorder %s146, %s149
      %p158 = scmp.eq.s32.totalorder %s21, 1
      %p159 = por %p157, %p158
      %p160 = scmp.ne.s32.totalorder %s149, %s150
      %p161 = scmp.eq.s32.totalorder %s21, 0
      %p162 = por %p160, %p161
      %p163 = scmp.ne.s32.totalorder %s149, %s150
      %p164 = scmp.eq.s32.totalorder %s22, 1
      %p165 = por %p163, %p164
      %p167 = scmp.ne.s32.totalorder %s150, %s166
      %p168 = scmp.eq.s32.totalorder %s22, 0
      %p169 = por %p167, %p168
      %p170 = scmp.le.s32.totalorder 1, %s16
      %p171 = scmp.lt.s32.totalorder %s16, 3
      %p172 = pnand %p170, %p171
      %p173 = pneg %p172
      // Predicated region
      $region9: #{tpu_custom_call.1} parent=5 // pred_check
        _
      $region10: #{tpu_custom_call.1} parent=5 // pred_check_branch
        %175 = sbr.rel (%p172) target = $region12
      $region11: #{tpu_custom_call.1} parent=5 // pred_region
        %s176 = ssub.s32 %s16, 1
        // Predicated region
        $region13: #{tpu_custom_call.1} parent=11 // pred_check
          %p177 = pneg %p37
        $region14: #{tpu_custom_call.1} parent=11 // pred_check_branch
          %179 = sbr.rel (%p177) target = $region16
        $region15: #{tpu_custom_call.1} parent=11 // pred_region
          %181 = vsyncadd [#allocation3], 0
          %s182 = sshll.u32 %s0, 4
          %s183 = int_to_ptr.hbm [resolvable:$true] %s182
          %s184 = sshll.u32 [#allocation2], 4
          %s185 = int_to_ptr.vmem [resolvable:$true] %s184
          %190 = dma.hbm_to_vmem [thread:$0]  %s183, 512, %s185, [#allocation3], 128, 128, 8
        $region16: #{tpu_custom_call.1} parent=11 // pred_fallthru
          _
        // Predicated region
        $region17: #{tpu_custom_call.1} parent=11 // pred_check
          %p191 = pneg %p58
        $region18: #{tpu_custom_call.1} parent=11 // pred_check_branch
          %193 = sbr.rel (%p191) target = $region20
        $region19: #{tpu_custom_call.1} parent=11 // pred_region
          %195 = vsyncadd [#allocation6], 0
          %s196 = sshll.u32 %s1, 4
          %s197 = int_to_ptr.hbm [resolvable:$true] %s196
          %s198 = sshll.u32 [#allocation5], 4
          %s199 = int_to_ptr.vmem [resolvable:$true] %s198
          %204 = dma.hbm_to_vmem [thread:$0]  %s197, 512, %s199, [#allocation6], 128, 128, 8
        $region20: #{tpu_custom_call.1} parent=11 // pred_fallthru
          _
      $region12: #{tpu_custom_call.1} parent=5 // pred_fallthru
        _
      %p205 = scmp.lt.s32.totalorder %s16, 2
      // Predicated region
      $region21: #{tpu_custom_call.1} parent=5 // pred_check
        %p206 = pneg %p205
      $region22: #{tpu_custom_call.1} parent=5 // pred_check_branch
        %208 = sbr.rel (%p206) target = $region24
      $region23: #{tpu_custom_call.1} parent=5 // pred_region
        // Predicated region
        $region25: #{tpu_custom_call.1} parent=23 // pred_check
          %p209 = pneg %p78
        $region26: #{tpu_custom_call.1} parent=23 // pred_check_branch
          %211 = sbr.rel (%p209) target = $region28
        $region27: #{tpu_custom_call.1} parent=23 // pred_region
          %s212 = sand.u32 %s16, 1
          %s213 = scalar_lea.sflag [#allocation3], %s212
          %s214 = sand.u32 %s68, 1
          %s215 = smul.addr %s214, 32
          %s216 = scalar_lea.vmem [#allocation7], %s215
          %218 = vsyncadd %s213, 0
          %s219 = smul.addr %s16, 8
          %s220 = scalar_lea.hbm %s2, %s219
          %s221 = sshll.u32 %s220, 4
          %s222 = int_to_ptr.hbm [resolvable:$true] %s221
          %s223 = sshll.u32 %s216, 4
          %s224 = int_to_ptr.vmem [resolvable:$true] %s223
          %229 = dma.hbm_to_vmem [thread:$0]  %s222, 512, %s224, %s213, 256, 128, 8
        $region28: #{tpu_custom_call.1} parent=23 // pred_fallthru
          _
        // Predicated region
        $region29: #{tpu_custom_call.1} parent=23 // pred_check
          %p230 = pneg %p104
        $region30: #{tpu_custom_call.1} parent=23 // pred_check_branch
          %232 = sbr.rel (%p230) target = $region32
        $region31: #{tpu_custom_call.1} parent=23 // pred_region
          %s233 = sand.u32 %s16, 1
          %s234 = scalar_lea.sflag [#allocation3], %s233
          %s235 = sand.u32 %s94, 1
          %s236 = smul.addr %s235, 32
          %s237 = scalar_lea.vmem [#allocation8], %s236
          %239 = vsyncadd %s234, 0
          %s240 = smul.addr %s16, 8
          %s241 = scalar_lea.hbm %s3, %s240
          %s242 = sshll.u32 %s241, 4
          %s243 = int_to_ptr.hbm [resolvable:$true] %s242
          %s244 = sshll.u32 %s237, 4
          %s245 = int_to_ptr.vmem [resolvable:$true] %s244
          %250 = dma.hbm_to_vmem [thread:$0]  %s243, 512, %s245, %s234, 256, 128, 8
        $region32: #{tpu_custom_call.1} parent=23 // pred_fallthru
          _
        // Predicated region
        $region33: #{tpu_custom_call.1} parent=23 // pred_check
          %p251 = pneg %p130
        $region34: #{tpu_custom_call.1} parent=23 // pred_check_branch
          %253 = sbr.rel (%p251) target = $region36
        $region35: #{tpu_custom_call.1} parent=23 // pred_region
          %s254 = sand.u32 %s16, 1
          %s255 = scalar_lea.sflag [#allocation3], %s254
          %s256 = sand.u32 %s120, 1
          %s257 = smul.addr %s256, 32
          %s258 = scalar_lea.vmem [#allocation9], %s257
          %260 = vsyncadd %s255, 0
          %s261 = smul.addr %s16, 8
          %s262 = scalar_lea.hbm %s4, %s261
          %s263 = sshll.u32 %s262, 4
          %s264 = int_to_ptr.hbm [resolvable:$true] %s263
          %s265 = sshll.u32 %s258, 4
          %s266 = int_to_ptr.vmem [resolvable:$true] %s265
          %271 = dma.hbm_to_vmem [thread:$0]  %s264, 512, %s266, %s255, 256, 128, 8
        $region36: #{tpu_custom_call.1} parent=23 // pred_fallthru
          _
      $region24: #{tpu_custom_call.1} parent=5 // pred_fallthru
        _
      %p272 = scmp.le.s32.totalorder 1, %s16
      %p273 = scmp.lt.s32.totalorder %s16, 3
      %p274 = pnand %p272, %p273
      %p275 = pneg %p274
      // Predicated region
      $region37: #{tpu_custom_call.1} parent=5 // pred_check
        _
      $region38: #{tpu_custom_call.1} parent=5 // pred_check_branch
        %277 = sbr.rel (%p274) target = $region40
      $region39: #{tpu_custom_call.1} parent=5 // pred_region
        %s278 = ssub.s32 %s16, 1
        // Predicated region
        $region41: #{tpu_custom_call.1} parent=39 // pred_check
          %p279 = pneg %p37
        $region42: #{tpu_custom_call.1} parent=39 // pred_check_branch
          %281 = sbr.rel (%p279) target = $region44
        $region43: #{tpu_custom_call.1} parent=39 // pred_region
          %283 = dma.done [#allocation3], 512
        $region44: #{tpu_custom_call.1} parent=39 // pred_fallthru
          _
        // Predicated region
        $region45: #{tpu_custom_call.1} parent=39 // pred_check
          %p284 = pneg %p58
        $region46: #{tpu_custom_call.1} parent=39 // pred_check_branch
          %286 = sbr.rel (%p284) target = $region48
        $region47: #{tpu_custom_call.1} parent=39 // pred_region
          %288 = dma.done [#allocation6], 512
        $region48: #{tpu_custom_call.1} parent=39 // pred_fallthru
          _
        %s289 = sand.u32 %s21, 1
        %s290 = scalar_lea.sflag [#allocation3], %s289
        %s291 = sand.u32 %s71, 1
        %s292 = smul.addr %s291, 32
        %s293 = scalar_lea.vmem [#allocation7], %s292
        // Predicated region
        $region49: #{tpu_custom_call.1} parent=39 // pred_check
          %p294 = pneg %p84
        $region50: #{tpu_custom_call.1} parent=39 // pred_check_branch
          %296 = sbr.rel (%p294) target = $region52
        $region51: #{tpu_custom_call.1} parent=39 // pred_region
          %298 = dma.done %s290, 512
        $region52: #{tpu_custom_call.1} parent=39 // pred_fallthru
          _
        %s299 = sand.u32 %s21, 1
        %s300 = scalar_lea.sflag [#allocation3], %s299
        %s301 = sand.u32 %s97, 1
        %s302 = smul.addr %s301, 32
        %s303 = scalar_lea.vmem [#allocation8], %s302
        // Predicated region
        $region53: #{tpu_custom_call.1} parent=39 // pred_check
          %p304 = pneg %p110
        $region54: #{tpu_custom_call.1} parent=39 // pred_check_branch
          %306 = sbr.rel (%p304) target = $region56
        $region55: #{tpu_custom_call.1} parent=39 // pred_region
          %308 = dma.done %s300, 512
        $region56: #{tpu_custom_call.1} parent=39 // pred_fallthru
          _
        %s309 = sand.u32 %s21, 1
        %s310 = scalar_lea.sflag [#allocation3], %s309
        %s311 = sand.u32 %s123, 1
        %s312 = smul.addr %s311, 32
        %s313 = scalar_lea.vmem [#allocation9], %s312
        // Predicated region
        $region57: #{tpu_custom_call.1} parent=39 // pred_check
          %p314 = pneg %p136
        $region58: #{tpu_custom_call.1} parent=39 // pred_check_branch
          %316 = sbr.rel (%p314) target = $region60
        $region59: #{tpu_custom_call.1} parent=39 // pred_region
          %318 = dma.done %s310, 512
        $region60: #{tpu_custom_call.1} parent=39 // pred_fallthru
          _
        %p319 = pneg %p37
        %p320 = pneg %p34
        %p321 = pneg %p58
        %p322 = pneg %p55
        %s323 = sand.u32 %s21, 1
        %s324 = scalar_lea.sflag [#allocation3], %s323
        %s325 = sand.u32 %s71, 1
        %s326 = smul.addr %s325, 32
        %s327 = scalar_lea.vmem [#allocation7], %s326
        %p328 = pneg %p84
        %p329 = pneg %p81
        %s330 = sand.u32 %s21, 1
        %s331 = scalar_lea.sflag [#allocation3], %s330
        %s332 = sand.u32 %s97, 1
        %s333 = smul.addr %s332, 32
        %s334 = scalar_lea.vmem [#allocation8], %s333
        %p335 = pneg %p110
        %p336 = pneg %p107
        %s337 = sand.u32 %s21, 1
        %s338 = scalar_lea.sflag [#allocation3], %s337
        %s339 = sand.u32 %s123, 1
        %s340 = smul.addr %s339, 32
        %s341 = scalar_lea.vmem [#allocation9], %s340
        %p342 = pneg %p136
        %p343 = pneg %p133
        %p344 = pneg %p162
        %p345 = pneg %p159
        %s346 = sand.u32 %s149, 1
        %s347 = scalar_lea.sflag [#allocation4], %s346
        %s348 = sand.u32 %s149, 1
        %s349 = smul.addr %s348, 32
        %s350 = scalar_lea.vmem [#allocation10], %s349
        %v352 = vld [vmem:[#allocation2] sm:$0xff]
        %v353 = vld [vmem:[#allocation2 + $0x8] sm:$0xff]
        %v354 = vld [vmem:[#allocation2 + $0x10] sm:$0xff]
        %v355 = vld [vmem:[#allocation2 + $0x18] sm:$0xff]
        %v356 = vpack.c.bf16 %v353, %v352
        %v357 = vpack.c.bf16 %v355, %v354
        %v358 = vld [vmem:[#allocation5] sm:$0xff]
        %v359 = vld [vmem:[#allocation5 + $0x8] sm:$0xff]
        %v360 = vld [vmem:[#allocation5 + $0x10] sm:$0xff]
        %v361 = vld [vmem:[#allocation5 + $0x18] sm:$0xff]
        %v362 = vpack.c.bf16 %v359, %v358
        %v363 = vpack.c.bf16 %v361, %v360
        %v364 = vld [vmem:[%s303] sm:$0xff]
        %v365 = vld [vmem:[%s303 + $0x8] sm:$0xff]
        %v366 = vld [vmem:[%s303 + $0x10] sm:$0xff]
        %v367 = vld [vmem:[%s303 + $0x18] sm:$0xff]
        %v368 = vpack.c.bf16 %v365, %v364
        %v369 = vpack.c.bf16 %v367, %v366
        %v370 = vld [vmem:[%s313] sm:$0xff]
        %v371 = vld [vmem:[%s313 + $0x8] sm:$0xff]
        %v372 = vld [vmem:[%s313 + $0x10] sm:$0xff]
        %v373 = vld [vmem:[%s313 + $0x18] sm:$0xff]
        %v374 = vpack.c.bf16 %v371, %v370
        %v375 = vpack.c.bf16 %v373, %v372
        %vm376 = vcmask 261120
        %v378 = vsel %vm376, %v362, 0
        %v381 = vsel %vm376, %v363, 0
        %383 = vmatpush.bf16.msra.mxu0 0
        %384 = vmatpush.bf16.msra.mxu0 0
        %385 = vmatpush.bf16.msra.mxu0 0
        %386 = vmatpush.bf16.msra.mxu0 0
        %387 = vmatpush.bf16.msra.mxu0 0
        %388 = vmatpush.bf16.msra.mxu0 0
        %389 = vmatpush.bf16.msra.mxu0 %v375
        %390 = vmatpush.bf16.msra.mxu0 %v374
        %391 = vmatmul.bf16.gmra.mxu0 %v378
        %v392 = vpop.f32.mrf.mxu0
        %v393 = vadd.f32 0.0, %v392
        %v394 = vpop.f32.mrf.mxu0
        %v395 = vadd.f32 0.0, %v394
        %396 = vmatmul.bf16.gmra.mxu0 %v381
        %v397 = vpop.f32.mrf.mxu0
        %v398 = vadd.f32 0.0, %v397
        %v399 = vpop.f32.mrf.mxu0
        %v400 = vadd.f32 0.0, %v399
        %401 = vdwg.mxu0
        %v403 = vsel %vm376, %v356, 0
        %v406 = vsel %vm376, %v357, 0
        %408 = vmatpush.bf16.msra.mxu0 0
        %409 = vmatpush.bf16.msra.mxu0 0
        %410 = vmatpush.bf16.msra.mxu0 0
        %411 = vmatpush.bf16.msra.mxu0 0
        %412 = vmatpush.bf16.msra.mxu0 0
        %413 = vmatpush.bf16.msra.mxu0 0
        %414 = vmatpush.bf16.msra.mxu0 %v369
        %415 = vmatpush.bf16.msra.mxu0 %v368
        %416 = vmatmul.bf16.gmra.mxu0 %v403
        %v417 = vpop.f32.mrf.mxu0
        %v418 = vadd.f32 %v393, %v417
        %v419 = vpop.f32.mrf.mxu0
        %v420 = vadd.f32 %v395, %v419
        %421 = vmatmul.bf16.gmra.mxu0 %v406
        %v422 = vpop.f32.mrf.mxu0
        %v423 = vadd.f32 %v398, %v422
        %v424 = vpop.f32.mrf.mxu0
        %v425 = vadd.f32 %v400, %v424
        %426 = vdwg.mxu0
        %v427 = vld [vmem:[%s293] sm:$0xff]
        %v428 = vld [vmem:[%s293 + $0x8] sm:$0xff]
        %v429 = vld [vmem:[%s293 + $0x10] sm:$0xff]
        %v430 = vld [vmem:[%s293 + $0x18] sm:$0xff]
        %v431 = vadd.f32 %v418, %v427
        %v432 = vadd.f32 %v420, %v428
        %v433 = vadd.f32 %v423, %v429
        %v434 = vadd.f32 %v425, %v430
        %v435 = vsub.f32 0.0, %v431
        %v436 = vsub.f32 0.0, %v432
        %v437 = vsub.f32 0.0, %v433
        %v438 = vsub.f32 0.0, %v434
        %v439 = vmul.f32 %v435, 1.442695
        %v440 = vpow.pop %v439
        %v441 = vmul.f32 %v436, 1.442695
        %v442 = vpow.pop %v441
        %v443 = vmul.f32 %v437, 1.442695
        %v444 = vpow.pop %v443
        %v445 = vmul.f32 %v438, 1.442695
        %v446 = vpow.pop %v445
        %v447 = vadd.f32 %v440, 1.0
        %v448 = vadd.f32 %v442, 1.0
        %v449 = vadd.f32 %v444, 1.0
        %v450 = vadd.f32 %v446, 1.0
        %v451 = vrcp.pop %v447
        %v452 = vrcp.pop %v448
        %v453 = vrcp.pop %v449
        %v454 = vrcp.pop %v450
        %455 = vst [vmem:[%s350] sm:$0xff] %v451
        %456 = vst [vmem:[%s350 + $0x8] sm:$0xff] %v452
        %457 = vst [vmem:[%s350 + $0x10] sm:$0xff] %v453
        %458 = vst [vmem:[%s350 + $0x18] sm:$0xff] %v454
        %s459 = sand.u32 %s149, 1
        %s460 = scalar_lea.sflag [#allocation4], %s459
        %s461 = sand.u32 %s149, 1
        %s462 = smul.addr %s461, 32
        %s463 = scalar_lea.vmem [#allocation10], %s462
        // Predicated region
        $region61: #{tpu_custom_call.1} parent=39 // pred_check
          %p464 = pneg %p159
        $region62: #{tpu_custom_call.1} parent=39 // pred_check_branch
          %466 = sbr.rel (%p464) target = $region64
        $region63: #{tpu_custom_call.1} parent=39 // pred_region
          %468 = vsyncadd %s460, 0
          %s469 = smul.addr %s21, 8
          %s470 = scalar_lea.hbm %s5, %s469
          %s471 = sshll.u32 %s463, 4
          %s472 = int_to_ptr.vmem [resolvable:$true] %s471
          %s473 = sshll.u32 %s470, 4
          %s474 = int_to_ptr.hbm [resolvable:$true] %s473
          %479 = dma.vmem_to_hbm [thread:$0]  %s472, 512, %s474, %s460, 128, 256, 8
        $region64: #{tpu_custom_call.1} parent=39 // pred_fallthru
          _
      $region40: #{tpu_custom_call.1} parent=5 // pred_fallthru
        _
      %p480 = scmp.le.s32.totalorder 2, %s16
      // Predicated region
      $region65: #{tpu_custom_call.1} parent=5 // pred_check
        %p481 = pneg %p480
      $region66: #{tpu_custom_call.1} parent=5 // pred_check_branch
        %483 = sbr.rel (%p481) target = $region68
      $region67: #{tpu_custom_call.1} parent=5 // pred_region
        %s484 = ssub.s32 %s16, 2
        // Predicated region
        $region69: #{tpu_custom_call.1} parent=67 // pred_check
          %p485 = pneg %p165
        $region70: #{tpu_custom_call.1} parent=67 // pred_check_branch
          %487 = sbr.rel (%p485) target = $region72
        $region71: #{tpu_custom_call.1} parent=67 // pred_region
          %s488 = sand.u32 %s150, 1
          %s489 = scalar_lea.sflag [#allocation4], %s488
          %s490 = sand.u32 %s150, 1
          %s491 = smul.addr %s490, 32
          %s492 = scalar_lea.vmem [#allocation10], %s491
          %494 = dma.done %s489, 512
        $region72: #{tpu_custom_call.1} parent=67 // pred_fallthru
          _
      $region68: #{tpu_custom_call.1} parent=5 // pred_fallthru
        _
    $region6: #{tpu_custom_call.1} parent=1 // loop_footer
      %s20 = sadd.s32 1, %s16
    $region7: #{tpu_custom_call.1} parent=1 // loop_footer_branch
      %15 = sbr.rel target = $region3
    $region8: #{tpu_custom_call.1} parent=1 // loop_exit
      _
    %495 = vsyncpa [#allocation3], 1
    %s496 = scalar_lea.sflag [#allocation3], 1
    %497 = vsyncpa %s496, 1
    %498 = vsyncpa [#allocation6], 1
    %499 = vsyncpa [#allocation4], 1
    %s500 = scalar_lea.sflag [#allocation4], 1
    %501 = vsyncpa %s500, 1

</llo_original>
